<compile_context>
chip_gen: v7x
topology: tpu7x:2x2x1
jax: 0.10.0
libtpu: 0.0.40
codegen_flags: <defaults>
</compile_context>

<pallas_src>
import functools

import jax
import jax.numpy as jnp
from jax import lax
from jax.experimental import pallas as pl
from jax.experimental.pallas import tpu as pltpu


def _round_up(x, m):
    return ((x + m - 1) // m) * m


def _cdiv(a, b):
    return -(-a // b)


def _js_kernel(coef_ref, par_ref, hm_ref, out_ref, *, n_chunks):
    """JS-divergence term of the DSNT loss for one block of joint rows.

    coef_ref: (8, HW)  rows 0..2 = xs, ys, base = kx*xs^2 + ky*ys^2
    par_ref : (R, 4)   per-row [ax, ay, c, w]; ax = -2*kx*mux, ay = -2*ky*muy,
                       c = kx*mux^2 + ky*muy^2, w = 0.5 * valid
    hm_ref  : (R, HW)  heatmap rows (native dtype, cast to f32 in-kernel)
    out_ref : (8, HW)  per-block partial sums (rows folded mod 8)
    """
    eps = 1e-24
    ln2 = 0.6931471805599453

    out_ref[...] = jnp.zeros_like(out_ref)

    def chunk(ci, carry):
        r0 = pl.multiple_of(ci * 8, 8)
        p = hm_ref[pl.ds(r0, 8), :].astype(jnp.float32)       # (8, HW)
        par = par_ref[pl.ds(r0, 8), :]                        # (8, 4)
        ax = par[:, 0:1]
        ay = par[:, 1:2]
        c = par[:, 2:3]
        w = par[:, 3:4]                                       # 0.5 * valid

        # loaded per chunk (cheap vld, load slots have slack) to keep
        # cross-iteration vreg pressure low
        xs = coef_ref[0:1, :]
        ys = coef_ref[1:2, :]
        base = coef_ref[2:3, :]

        # expanded gaussian exponent: kx*(xs - mux)^2 + ky*(ys - muy)^2
        logit = base + ax * xs + ay * ys + c                  # (8, HW)
        g_un = jnp.exp(logit)
        z = jnp.sum(g_un, axis=1, keepdims=True) + eps        # (8, 1)
        inv_z = pl.reciprocal(z, approx=True)                 # per-row, EUP slot
        g = g_un * inv_z
        # analytic log(g) = logit - log(z).  When exp(logit) underflows this
        # differs from log(g + eps) in the reference, but it is then multiplied
        # by g == 0, so it is benign (do not "fix" by clamping).
        log_g = logit - jnp.log(z)
        log_p = jnp.log(p + eps)

        # fused JS divergence:
        #   p*(log p - log m) + g*(log g - log m), m = (p + g)/2
        # = p*log p + g*log g - (p+g)*(log(p+g+eps) - ln2)
        s = p + g
        elems = p * log_p + g * log_g - s * (jnp.log(s + eps) - ln2)
        out_ref[...] += w * elems                             # mask + 0.5 via w
        return carry

    lax.fori_loop(0, n_chunks, chunk, 0, unroll=(n_chunks <= 8))


def coordinate_loss(heatmaps, coords, targets, sigma_t=1.0):
    """heatmaps: [B,S,J,H,W]; coords: [B,S,J,2]; targets: [B,J,2] or [B,S,J,2]."""
    coords = coords.astype(jnp.float32)
    targets = targets.astype(jnp.float32)

    B, S, J, H, W = heatmaps.shape
    HW = H * W
    N = B * S * J

    if targets.ndim == 3:                      # unsqueeze + repeat over stages
        targets = jnp.broadcast_to(targets[:, None], (B, S, J, 2))

    # target normalization; the PyTorch module hardcodes out = [31, 31]
    tn = ((targets / 255.0) * 2.0 + 1.0) / 31.0 - 1.0

    # dsntnn.euclidean_losses — trivial per-joint math, done in plain JAX
    euc_sum = jnp.sum(jnp.sqrt(jnp.sum((coords - tn) ** 2, axis=-1)))

    # ---- JS term via the Pallas kernel over [N, HW] row blocks ----
    kx = -0.5 * (W / (2.0 * sigma_t)) ** 2
    ky = -0.5 * (H / (2.0 * sigma_t)) ** 2

    # Block sizing: keep the double-buffered heatmap block <= ~4 MiB (safe on
    # v7x's 64 MiB VMEM), minimize zero padding, and use >= 2 blocks when
    # possible so the "parallel" grid axis can shard across both v7x cores.
    hm_itemsize = jnp.dtype(heatmaps.dtype).itemsize
    r_cap = (4 * 1024 * 1024) // (2 * HW * hm_itemsize)
    r_cap = max(8, min(256, (r_cap // 8) * 8))
    num_blocks = max(1, _cdiv(N, r_cap))
    if num_blocks == 1 and N > 8:
        num_blocks = 2
    R = _round_up(_cdiv(N, num_blocks), 8)
    N_pad = R * num_blocks
    pad = N_pad - N

    # merged per-row params [ax, ay, c, w] (w = 0.5*valid; 0 for padded rows)
    mu = tn.reshape(N, 2)
    mux, muy = mu[:, 0], mu[:, 1]
    ax = -2.0 * kx * mux
    ay = -2.0 * ky * muy
    c = kx * mux * mux + ky * muy * muy
    w = jnp.full((N,), 0.5, dtype=jnp.float32)
    params = jnp.stack([ax, ay, c, w], axis=-1).astype(jnp.float32)   # (N, 4)

    # heatmaps stay in their native dtype; the kernel casts to f32 in-register
    hm = heatmaps.reshape(N, HW)
    if pad:
        params = jnp.pad(params, ((0, pad), (0, 0)))
        hm = jnp.pad(hm, ((0, pad), (0, 0)))

    # grid-invariant coordinate rows: xs, ys, base = kx*xs^2 + ky*ys^2
    # (flattened with k = h*W + w, matching heatmaps.reshape(N, HW))
    xs = (2.0 * jnp.arange(W, dtype=jnp.float32) - (W - 1)) / W
    ys = (2.0 * jnp.arange(H, dtype=jnp.float32) - (H - 1)) / H
    xs_flat = jnp.tile(xs, (H,))
    ys_flat = jnp.repeat(ys, W)
    base = kx * xs_flat * xs_flat + ky * ys_flat * ys_flat
    coefs = jnp.pad(jnp.stack([xs_flat, ys_flat, base], axis=0),
                    ((0, 5), (0, 0)))                                 # (8, HW)

    kernel = functools.partial(_js_kernel, n_chunks=R // 8)

    partials = pl.pallas_call(
        kernel,
        out_shape=jax.ShapeDtypeStruct((8 * num_blocks, HW), jnp.float32),
        grid=(num_blocks,),
        in_specs=[
            pl.BlockSpec((8, HW), lambda i: (0, 0)),     # coefs (grid-invariant)
            pl.BlockSpec((R, 4), lambda i: (i, 0)),      # per-row params
            pl.BlockSpec((R, HW), lambda i: (i, 0)),     # heatmap rows
        ],
        out_specs=pl.BlockSpec((8, HW), lambda i: (i, 0)),
        compiler_params=pltpu.CompilerParams(
            dimension_semantics=("parallel",),
            vmem_limit_bytes=32 * 1024 * 1024),
    )(coefs, params, hm)

    js_sum = jnp.sum(partials)

    # dsntnn.average_loss over (stages, joints) + mean over batch == mean over all
    return (euc_sum + js_sum) / float(N)


def _reference_loss(heatmaps, coords, targets, sigma_t=1.0):
    """Pure-JAX reference mirroring the PyTorch/dsntnn math."""
    heatmaps = heatmaps.astype(jnp.float32)
    B, S, J, H, W = heatmaps.shape
    if targets.ndim == 3:
        targets = jnp.broadcast_to(targets[:, None], (B, S, J, 2))
    tn = ((targets / 255.0) * 2.0 + 1.0) / 31.0 - 1.0
    euc = jnp.sqrt(jnp.sum((coords - tn) ** 2, axis=-1))
    xs = (2.0 * jnp.arange(W, dtype=jnp.float32) - (W - 1)) / W
    ys = (2.0 * jnp.arange(H, dtype=jnp.float32) - (H - 1)) / H
    mu_x = tn[..., 0][..., None, None]
    mu_y = tn[..., 1][..., None, None]
    kx = -0.5 * (W / (2.0 * sigma_t)) ** 2
    ky = -0.5 * (H / (2.0 * sigma_t)) ** 2
    g = jnp.exp(kx * (xs[None, None, None, None, :] - mu_x) ** 2
                + ky * (ys[None, None, None, :, None] - mu_y) ** 2)
    g = g / (jnp.sum(g, axis=(-2, -1), keepdims=True) + 1e-24)
    eps = 1e-24
    m = 0.5 * (heatmaps + g)
    log_m = jnp.log(m + eps)
    kl_pm = jnp.sum(heatmaps * (jnp.log(heatmaps + eps) - log_m), axis=(-2, -1))
    kl_qm = jnp.sum(g * (jnp.log(g + eps) - log_m), axis=(-2, -1))
    js = 0.5 * kl_pm + 0.5 * kl_qm
    return jnp.mean(euc + js)


if __name__ == "__main__":
    key = jax.random.PRNGKey(0)
    B, S, J, H, W = 2, 2, 4, 32, 32
    k1, k2, k3 = jax.random.split(key, 3)

    logits = jax.random.normal(k1, (B, S, J, H, W), dtype=jnp.float32)
    heatmaps = jax.nn.softmax(logits.reshape(B, S, J, H * W), axis=-1)
    heatmaps = heatmaps.reshape(B, S, J, H, W)
    coords = jax.random.uniform(k2, (B, S, J, 2), minval=-1.0, maxval=1.0,
                                dtype=jnp.float32)
    # 3-D targets exercise the unsqueeze/repeat branch of the PyTorch forward.
    targets = jax.random.uniform(k3, (B, J, 2), minval=0.0, maxval=255.0,
                                 dtype=jnp.float32)

    loss = jax.block_until_ready(coordinate_loss(heatmaps, coords, targets))
    ref = jax.block_until_ready(_reference_loss(heatmaps, coords, targets))

    assert jnp.isfinite(loss), loss
    # approx per-row reciprocal (EUP vrcp) -> allow ~1e-3 relative slack
    assert jnp.allclose(loss, ref, rtol=1e-3, atol=1e-4), (loss, ref)
    print("KERNEL_OK")
</pallas_src>

<mosaic_0001>
module attributes {stable_mosaic.version = 11 : i64} {
  func.func @_js_kernel(%arg0: i32, %arg1: memref<8x1024xf32, #tpu.memory_space<vmem>>, %arg2: memref<8x4xf32, #tpu.memory_space<vmem>>, %arg3: memref<8x1024xf32, #tpu.memory_space<vmem>>, %arg4: memref<8x1024xf32, #tpu.memory_space<vmem>>) attributes {dimension_semantics = [#tpu.dimension_semantics<parallel>], iteration_bounds = array<i64: 2>, scalar_prefetch = 0 : i64, scratch_operands = 0 : i64, tpu.core_type = #tpu.core_type<tc>, window_params = [{pipeline_mode = #tpu.pipeline_mode<synchronous>, transform_indices = @transform_0, window_bounds = array<i64: 8, 1024>}, {transform_indices = @transform_1, window_bounds = array<i64: 8, 4>}, {transform_indices = @transform_2, window_bounds = array<i64: 8, 1024>}, {transform_indices = @transform_3, window_bounds = array<i64: 8, 1024>}]} {
    %cst = arith.constant 0.000000e+00 : f32
    %0 = vector.broadcast %cst : f32 to vector<8x1024xf32>
    %c0 = arith.constant 0 : index
    %c0_0 = arith.constant 0 : index
    %1 = vector.load %arg4[%c0, %c0_0] : memref<8x1024xf32, #tpu.memory_space<vmem>>, vector<8x1024xf32>
    tpu.vector_store %arg4[%c0, %c0_0], %0 {strides = array<i32>} : memref<8x1024xf32, #tpu.memory_space<vmem>>, vector<8x1024xf32>,
    %c0_i32 = arith.constant 0 : i32
    %c8_i32 = arith.constant 8 : i32
    %2 = arith.muli %c0_i32, %c8_i32 : i32
    %3 = tpu.assume_multiple %2, 8 : i32
    %4 = arith.index_cast %3 : i32 to index
    %c0_1 = arith.constant 0 : index
    %5 = vector.load %arg3[%4, %c0_1] : memref<8x1024xf32, #tpu.memory_space<vmem>>, vector<8x1024xf32>
    %6 = arith.index_cast %3 : i32 to index
    %c0_2 = arith.constant 0 : index
    %7 = vector.load %arg2[%6, %c0_2] : memref<8x4xf32, #tpu.memory_space<vmem>>, vector<8x4xf32>
    %8 = vector.extract_strided_slice %7 {offsets = [0, 0], sizes = [8, 1], strides = [1, 1]} : vector<8x4xf32> to vector<8x1xf32>
    %9 = vector.extract_strided_slice %7 {offsets = [0, 1], sizes = [8, 1], strides = [1, 1]} : vector<8x4xf32> to vector<8x1xf32>
    %10 = vector.extract_strided_slice %7 {offsets = [0, 2], sizes = [8, 1], strides = [1, 1]} : vector<8x4xf32> to vector<8x1xf32>
    %11 = vector.extract_strided_slice %7 {offsets = [0, 3], sizes = [8, 1], strides = [1, 1]} : vector<8x4xf32> to vector<8x1xf32>
    %c0_3 = arith.constant 0 : index
    %c0_4 = arith.constant 0 : index
    %12 = vector.load %arg1[%c0_3, %c0_4] : memref<8x1024xf32, #tpu.memory_space<vmem>>, vector<1x1024xf32>
    %c1 = arith.constant 1 : index
    %c0_5 = arith.constant 0 : index
    %13 = vector.load %arg1[%c1, %c0_5] : memref<8x1024xf32, #tpu.memory_space<vmem>>, vector<1x1024xf32>
    %c2 = arith.constant 2 : index
    %c0_6 = arith.constant 0 : index
    %14 = vector.load %arg1[%c2, %c0_6] : memref<8x1024xf32, #tpu.memory_space<vmem>>, vector<1x1024xf32>
    %15 = vector.broadcast %8 : vector<8x1xf32> to vector<8x1024xf32>
    %16 = vector.broadcast %12 : vector<1x1024xf32> to vector<8x1024xf32>
    %17 = arith.mulf %15, %16 : vector<8x1024xf32>
    %18 = vector.broadcast %14 : vector<1x1024xf32> to vector<8x1024xf32>
    %19 = arith.addf %18, %17 : vector<8x1024xf32>
    %20 = vector.broadcast %9 : vector<8x1xf32> to vector<8x1024xf32>
    %21 = vector.broadcast %13 : vector<1x1024xf32> to vector<8x1024xf32>
    %22 = arith.mulf %20, %21 : vector<8x1024xf32>
    %23 = arith.addf %19, %22 : vector<8x1024xf32>
    %24 = vector.broadcast %10 : vector<8x1xf32> to vector<8x1024xf32>
    %25 = arith.addf %23, %24 : vector<8x1024xf32>
    %26 = math.exp %25 : vector<8x1024xf32>
    %cst_7 = arith.constant dense<0.000000e+00> : vector<8xf32>
    %27 = vector.multi_reduction <add>, %26, %cst_7 [1] : vector<8x1024xf32> to vector<8xf32>
    %28 = vector.shape_cast %27 : vector<8xf32> to vector<8x1xf32>
    %cst_8 = arith.constant 1.000000e-24 : f32
    %29 = vector.broadcast %cst_8 : f32 to vector<8x1xf32>
    %30 = arith.addf %28, %29 : vector<8x1xf32>
    %31 = tpu.reciprocal %30 {approx = true} : vector<8x1xf32> -> vector<8x1xf32>
    %32 = vector.broadcast %31 : vector<8x1xf32> to vector<8x1024xf32>
    %33 = arith.mulf %26, %32 : vector<8x1024xf32>
    %34 = math.log %30 : vector<8x1xf32>
    %35 = vector.broadcast %34 : vector<8x1xf32> to vector<8x1024xf32>
    %36 = arith.subf %25, %35 : vector<8x1024xf32>
    %cst_9 = arith.constant 1.000000e-24 : f32
    %37 = vector.broadcast %cst_9 : f32 to vector<8x1024xf32>
    %38 = arith.addf %5, %37 : vector<8x1024xf32>
    %39 = math.log %38 : vector<8x1024xf32>
    %40 = arith.addf %5, %33 : vector<8x1024xf32>
    %41 = arith.mulf %5, %39 : vector<8x1024xf32>
    %42 = arith.mulf %33, %36 : vector<8x1024xf32>
    %43 = arith.addf %41, %42 : vector<8x1024xf32>
    %cst_10 = arith.constant 1.000000e-24 : f32
    %44 = vector.broadcast %cst_10 : f32 to vector<8x1024xf32>
    %45 = arith.addf %40, %44 : vector<8x1024xf32>
    %46 = math.log %45 : vector<8x1024xf32>
    %cst_11 = arith.constant 0.693147182 : f32
    %47 = vector.broadcast %cst_11 : f32 to vector<8x1024xf32>
    %48 = arith.subf %46, %47 : vector<8x1024xf32>
    %49 = arith.mulf %40, %48 : vector<8x1024xf32>
    %50 = arith.subf %43, %49 : vector<8x1024xf32>
    %c0_12 = arith.constant 0 : index
    %c0_13 = arith.constant 0 : index
    %51 = vector.load %arg4[%c0_12, %c0_13] : memref<8x1024xf32, #tpu.memory_space<vmem>>, vector<8x1024xf32>
    %52 = vector.broadcast %11 : vector<8x1xf32> to vector<8x1024xf32>
    %53 = arith.mulf %52, %50 : vector<8x1024xf32>
    %54 = arith.addf %51, %53 : vector<8x1024xf32>
    %c0_14 = arith.constant 0 : index
    %c0_15 = arith.constant 0 : index
    %55 = vector.load %arg4[%c0_14, %c0_15] : memref<8x1024xf32, #tpu.memory_space<vmem>>, vector<8x1024xf32>
    tpu.vector_store %arg4[%c0_14, %c0_15], %54 {strides = array<i32>} : memref<8x1024xf32, #tpu.memory_space<vmem>>, vector<8x1024xf32>,
    %c1_i32 = arith.constant 1 : i32
    return
  }
  func.func @transform_0(%arg0: i32) -> (i32, i32) {
    %c0_i32 = arith.constant 0 : i32
    %c0_i32_0 = arith.constant 0 : i32
    %c0_i32_1 = arith.constant 0 : i32
    return %c0_i32, %c0_i32_0 : i32, i32
  }
  func.func @transform_1(%arg0: i32) -> (i32, i32) {
    %c0_i32 = arith.constant 0 : i32
    %c0_i32_0 = arith.constant 0 : i32
    return %arg0, %c0_i32 : i32, i32
  }
  func.func @transform_2(%arg0: i32) -> (i32, i32) {
    %c0_i32 = arith.constant 0 : i32
    %c0_i32_0 = arith.constant 0 : i32
    return %arg0, %c0_i32 : i32, i32
  }
  func.func @transform_3(%arg0: i32) -> (i32, i32) {
    %c0_i32 = arith.constant 0 : i32
    %c0_i32_0 = arith.constant 0 : i32
    return %arg0, %c0_i32 : i32, i32
  }
}

</mosaic_0001>

<llo_original>
// kernel: tpu_custom_call.1
$region0: #{tpu_custom_call.1}
  #allocation0 [shape = 'u32[]', space=smem, size = 0x4, offset = 0x4, fixed_abs, tag = 'smem constant byte address 0x4 - core index']
  #allocation1 [shape = 'u32[144,128]{1,0:T(1,128)}', space=vmem, size = 0x12000, scoped, tag = 'internal scratch']
  %s0 = inlined_call_operand.hbm [shape: f32[8,1024], index: 0, kind: input, shape index: {}]
  %s1 = inlined_call_operand.vmem [shape: f32[16,4], index: 1, kind: input, shape index: {}]
  %s2 = inlined_call_operand.hbm [shape: f32[16,1024], index: 2, kind: input, shape index: {}]
  %s3 = inlined_call_operand.hbm [shape: f32[16,1024], index: 3, kind: output, shape index: {}]
  %s4 = sld [smem:[#allocation0]]
  $region53: #{tpu_custom_call.1} parent=0
    _
  %s6 = ssub.s32 1, %s4
  %s7 = scalar_select 0, %s6, %s4
  $region1: #{tpu_custom_call.1} parent=0
    #allocation2 [shape = 'u8[32768]{0}', space=vmem, size = 0x8000, scoped, tag = 'input window, operand 0, single buffered']
    #allocation3 [shape = 's32[2]{0}', space=sflag, size = 0x8, scoped, tag = 'scoped memory for tpu_custom_call.1']
    #allocation4 [shape = 's32[2]{0}', space=sflag, size = 0x8, scoped, tag = 'scoped memory for tpu_custom_call.1']
    #allocation5 [shape = 'u8[65536]{0}', space=vmem, size = 0x10000, scoped, tag = 'input window, operand 2']
    #allocation6 [shape = 's32[2]{0}', space=sflag, size = 0x8, scoped, tag = 'scoped memory for tpu_custom_call.1']
    #allocation7 [shape = 'u8[65536]{0}', space=vmem, size = 0x10000, scoped, tag = 'output window, operand 0']
    %8 = vsyncpa [#allocation3], 0
    %9 = vsyncpa [#allocation6], 0
    %s10 = scalar_lea.sflag [#allocation6], 1
    %11 = vsyncpa %s10, 0
    %12 = vsyncpa [#allocation4], 0
    %s13 = scalar_lea.sflag [#allocation4], 1
    %14 = vsyncpa %s13, 0
    loop: start=0, step=1, limit=4
    $region2: #{tpu_custom_call.1} parent=1 // loop_pre_header
      _
    $region3: #{tpu_custom_call.1} parent=1 // loop_header
      %s16 = sphi 0, %s20
      %p17 = scmp.ge.s32.totalorder %s16, 4
      %s24 = sphi 0, %s24
      %s26 = sphi 0, %s24
      %s27 = sphi 0, %s26
      %s41 = sphi 0, %s27
      %s47 = sphi 0, %s49
      %s50 = sphi 0, %s47
      %s51 = sphi 0, %s50
      %s67 = sphi 0, %s51
      %s73 = sphi 0, %s75
      %s76 = sphi 0, %s73
      %s77 = sphi 0, %s76
      %s93 = sphi 0, %s77
      %s99 = sphi 0, %s101
      %s102 = sphi 0, %s99
      %s103 = sphi 0, %s102
      %s119 = sphi 0, %s103
    $region4: #{tpu_custom_call.1} parent=1 // loop_header_branch
      %19 = sbr.rel (%p17) target = $region8
    $region5: #{tpu_custom_call.1} parent=1 // loop_body
      %s21 = ssub.s32 %s16, 1
      %s22 = ssub.s32 %s16, 2
      %s23 = sadd.s32 %s16, 1
      %s25 = sadd.s32 %s24, 1
      %p28 = scmp.eq.s32.totalorder %s16, 1
      %p29 = scmp.ne.s32.totalorder %s24, %s26
      %p30 = scmp.eq.s32.totalorder %s16, 0
      %p31 = por %p29, %p30
      %p32 = scmp.ne.s32.totalorder %s24, %s26
      %p33 = scmp.eq.s32.totalorder %s21, 1
      %p34 = por %p32, %p33
      %p35 = scmp.ne.s32.totalorder %s26, %s27
      %p36 = scmp.eq.s32.totalorder %s21, 0
      %p37 = por %p35, %p36
      %p38 = scmp.ne.s32.totalorder %s26, %s27
      %p39 = scmp.eq.s32.totalorder %s22, 1
      %p40 = por %p38, %p39
      %p42 = scmp.ne.s32.totalorder %s27, %s41
      %p43 = scmp.eq.s32.totalorder %s22, 0
      %p44 = por %p42, %p43
      %s45 = ssub.s32 %s16, %s23
      %p46 = scmp.eq.s32.totalorder %s45, 0
      %s48 = sadd.s32 %s47, 1
      %s49 = scalar_select %p46, %s47, %s48
      %p52 = pneg %p46
      %p53 = scmp.eq.s32.totalorder %s16, 1
      %p54 = por %p52, %p53
      %p55 = scmp.ne.s32.totalorder %s47, %s50
      %p56 = scmp.eq.s32.totalorder %s16, 0
      %p57 = por %p55, %p56
      %p58 = scmp.ne.s32.totalorder %s47, %s50
      %p59 = scmp.eq.s32.totalorder %s21, 1
      %p60 = por %p58, %p59
      %p61 = scmp.ne.s32.totalorder %s50, %s51
      %p62 = scmp.eq.s32.totalorder %s21, 0
      %p63 = por %p61, %p62
      %p64 = scmp.ne.s32.totalorder %s50, %s51
      %p65 = scmp.eq.s32.totalorder %s22, 1
      %p66 = por %p64, %p65
      %p68 = scmp.ne.s32.totalorder %s51, %s67
      %p69 = scmp.eq.s32.totalorder %s22, 0
      %p70 = por %p68, %p69
      %s71 = ssub.s32 %s16, %s23
      %p72 = scmp.eq.s32.totalorder %s71, 0
      %s74 = sadd.s32 %s73, 1
      %s75 = scalar_select %p72, %s73, %s74
      %p78 = pneg %p72
      %p79 = scmp.eq.s32.totalorder %s16, 1
      %p80 = por %p78, %p79
      %p81 = scmp.ne.s32.totalorder %s73, %s76
      %p82 = scmp.eq.s32.totalorder %s16, 0
      %p83 = por %p81, %p82
      %p84 = scmp.ne.s32.totalorder %s73, %s76
      %p85 = scmp.eq.s32.totalorder %s21, 1
      %p86 = por %p84, %p85
      %p87 = scmp.ne.s32.totalorder %s76, %s77
      %p88 = scmp.eq.s32.totalorder %s21, 0
      %p89 = por %p87, %p88
      %p90 = scmp.ne.s32.totalorder %s76, %s77
      %p91 = scmp.eq.s32.totalorder %s22, 1
      %p92 = por %p90, %p91
      %p94 = scmp.ne.s32.totalorder %s77, %s93
      %p95 = scmp.eq.s32.totalorder %s22, 0
      %p96 = por %p94, %p95
      %s97 = ssub.s32 %s16, %s23
      %p98 = scmp.eq.s32.totalorder %s97, 0
      %s100 = sadd.s32 %s99, 1
      %s101 = scalar_select %p98, %s99, %s100
      %p104 = pneg %p98
      %p105 = scmp.eq.s32.totalorder %s16, 1
      %p106 = por %p104, %p105
      %p107 = scmp.ne.s32.totalorder %s99, %s102
      %p108 = scmp.eq.s32.totalorder %s16, 0
      %p109 = por %p107, %p108
      %p110 = scmp.ne.s32.totalorder %s99, %s102
      %p111 = scmp.eq.s32.totalorder %s21, 1
      %p112 = por %p110, %p111
      %p113 = scmp.ne.s32.totalorder %s102, %s103
      %p114 = scmp.eq.s32.totalorder %s21, 0
      %p115 = por %p113, %p114
      %p116 = scmp.ne.s32.totalorder %s102, %s103
      %p117 = scmp.eq.s32.totalorder %s22, 1
      %p118 = por %p116, %p117
      %p120 = scmp.ne.s32.totalorder %s103, %s119
      %p121 = scmp.eq.s32.totalorder %s22, 0
      %p122 = por %p120, %p121
      %p123 = scmp.le.s32.totalorder 1, %s16
      %p124 = scmp.lt.s32.totalorder %s16, 3
      %p125 = pnand %p123, %p124
      %p126 = pneg %p125
      // Predicated region
      $region9: #{tpu_custom_call.1} parent=5 // pred_check
        _
      $region10: #{tpu_custom_call.1} parent=5 // pred_check_branch
        %128 = sbr.rel (%p125) target = $region12
      $region11: #{tpu_custom_call.1} parent=5 // pred_region
        %s129 = ssub.s32 %s16, 1
        // Predicated region
        $region13: #{tpu_custom_call.1} parent=11 // pred_check
          %p130 = pneg %p37
        $region14: #{tpu_custom_call.1} parent=11 // pred_check_branch
          %132 = sbr.rel (%p130) target = $region16
        $region15: #{tpu_custom_call.1} parent=11 // pred_region
          %s134 = ssub.s32 1024, 1024
          %135 = vsyncadd [#allocation3], %s134
          %s137 = sshll.u32 [#allocation2], 4
          %s138 = int_to_ptr.vmem [resolvable:$true] %s137
          %140 = dma.hbm_to_vmem [thread:$0]  %s0, 1024, %s138, [#allocation3]
        $region16: #{tpu_custom_call.1} parent=11 // pred_fallthru
          _
      $region12: #{tpu_custom_call.1} parent=5 // pred_fallthru
        _
      %p141 = scmp.lt.s32.totalorder %s16, 2
      // Predicated region
      $region17: #{tpu_custom_call.1} parent=5 // pred_check
        %p142 = pneg %p141
      $region18: #{tpu_custom_call.1} parent=5 // pred_check_branch
        %144 = sbr.rel (%p142) target = $region20
      $region19: #{tpu_custom_call.1} parent=5 // pred_region
        // Predicated region
        $region21: #{tpu_custom_call.1} parent=19 // pred_check
          %p145 = pneg %p57
        $region22: #{tpu_custom_call.1} parent=19 // pred_check_branch
          %147 = sbr.rel (%p145) target = $region24
        $region23: #{tpu_custom_call.1} parent=19 // pred_region
          %p148 = scmp.lt.s32.totalorder %s16, 1
          %s149 = scalar_select %p148, %s16, 1
          %s150 = smul.addr %s149, 8
          %s151 = scalar_lea.vmem %s1, %s150
        $region24: #{tpu_custom_call.1} parent=19 // pred_fallthru
          _
        // Predicated region
        $region25: #{tpu_custom_call.1} parent=19 // pred_check
          %p152 = pneg %p83
        $region26: #{tpu_custom_call.1} parent=19 // pred_check_branch
          %154 = sbr.rel (%p152) target = $region28
        $region27: #{tpu_custom_call.1} parent=19 // pred_region
          %s155 = sand.u32 %s73, 1
          %s156 = scalar_lea.sflag [#allocation6], %s155
          %s157 = sand.u32 %s73, 1
          %s158 = smul.addr %s157, 64
          %s159 = scalar_lea.vmem [#allocation5], %s158
          %s161 = ssub.s32 1024, 1024
          %162 = vsyncadd %s156, %s161
          %s163 = smul.addr %s16, 8
          %s164 = smul.addr %s163, 128
          %s165 = scalar_lea.hbm %s2, %s164
          %s167 = sshll.u32 %s159, 4
          %s168 = int_to_ptr.vmem [resolvable:$true] %s167
          %170 = dma.hbm_to_vmem [thread:$0]  %s165, 1024, %s168, %s156
        $region28: #{tpu_custom_call.1} parent=19 // pred_fallthru
          _
      $region20: #{tpu_custom_call.1} parent=5 // pred_fallthru
        _
      %p171 = scmp.le.s32.totalorder 1, %s16
      %p172 = scmp.lt.s32.totalorder %s16, 3
      %p173 = pnand %p171, %p172
      %p174 = pneg %p173
      // Predicated region
      $region29: #{tpu_custom_call.1} parent=5 // pred_check
        _
      $region30: #{tpu_custom_call.1} parent=5 // pred_check_branch
        %176 = sbr.rel (%p173) target = $region32
      $region31: #{tpu_custom_call.1} parent=5 // pred_region
        %s177 = ssub.s32 %s16, 1
        // Predicated region
        $region33: #{tpu_custom_call.1} parent=31 // pred_check
          %p178 = pneg %p37
        $region34: #{tpu_custom_call.1} parent=31 // pred_check_branch
          %180 = sbr.rel (%p178) target = $region36
        $region35: #{tpu_custom_call.1} parent=31 // pred_region
          %181 = dma.done [#allocation3], 1024
        $region36: #{tpu_custom_call.1} parent=31 // pred_fallthru
          _
        %s182 = sand.u32 %s76, 1
        %s183 = scalar_lea.sflag [#allocation6], %s182
        %s184 = sand.u32 %s76, 1
        %s185 = smul.addr %s184, 64
        %s186 = scalar_lea.vmem [#allocation5], %s185
        // Predicated region
        $region37: #{tpu_custom_call.1} parent=31 // pred_check
          %p187 = pneg %p89
        $region38: #{tpu_custom_call.1} parent=31 // pred_check_branch
          %189 = sbr.rel (%p187) target = $region40
        $region39: #{tpu_custom_call.1} parent=31 // pred_region
          %190 = dma.done %s183, 1024
        $region40: #{tpu_custom_call.1} parent=31 // pred_fallthru
          _
        %p191 = pneg %p37
        %p192 = pneg %p34
        %p193 = scmp.lt.s32.totalorder %s21, 1
        %s194 = scalar_select %p193, %s21, 1
        %s195 = smul.addr %s194, 8
        %s196 = scalar_lea.vmem %s1, %s195
        %p197 = pneg %p63
        %p198 = pneg %p60
        %s199 = sand.u32 %s76, 1
        %s200 = scalar_lea.sflag [#allocation6], %s199
        %s201 = sand.u32 %s76, 1
        %s202 = smul.addr %s201, 64
        %s203 = scalar_lea.vmem [#allocation5], %s202
        %p204 = pneg %p89
        %p205 = pneg %p86
        %p206 = pneg %p115
        %p207 = pneg %p112
        %s208 = sand.u32 %s102, 1
        %s209 = scalar_lea.sflag [#allocation4], %s208
        %s210 = sand.u32 %s102, 1
        %s211 = smul.addr %s210, 64
        %s212 = scalar_lea.vmem [#allocation7], %s211
        %p213 = scmp.lt.s32.totalorder %s21, 1
        %s214 = scalar_select %p213, %s21, 1
        %s215 = smul.addr %s214, 8
        %s216 = scalar_lea.vmem %s1, %s215
        %217 = vst [vmem:[%s212] sm:$0xff] 0.0
        %218 = vst [vmem:[%s212 + $0x8] sm:$0xff] 0.0
        %219 = vst [vmem:[%s212 + $0x10] sm:$0xff] 0.0
        %220 = vst [vmem:[%s212 + $0x18] sm:$0xff] 0.0
        %221 = vst [vmem:[%s212 + $0x20] sm:$0xff] 0.0
        %222 = vst [vmem:[%s212 + $0x28] sm:$0xff] 0.0
        %223 = vst [vmem:[%s212 + $0x30] sm:$0xff] 0.0
        %224 = vst [vmem:[%s212 + $0x38] sm:$0xff] 0.0
        %s225 = smul.u32 0, 8
        %s226 = smul.addr %s225, 8
        %s227 = scalar_lea.vmem %s186, %s226 [#allocation5]
        %v228 = vld [vmem:[%s227] sm:$0xff]
        %v229 = vld [vmem:[%s227 + $0x8] sm:$0xff]
        %v230 = vld [vmem:[%s227 + $0x10] sm:$0xff]
        %v231 = vld [vmem:[%s227 + $0x18] sm:$0xff]
        %v232 = vld [vmem:[%s227 + $0x20] sm:$0xff]
        %v233 = vld [vmem:[%s227 + $0x28] sm:$0xff]
        %v234 = vld [vmem:[%s227 + $0x30] sm:$0xff]
        %v235 = vld [vmem:[%s227 + $0x38] sm:$0xff]
        %v236 = vld [vmem:[%s216] sm:$0xff]
        %v237 = vld [vmem:[#allocation2] ss:$8 sm:$0xf]
        %v238 = vld [vmem:[#allocation2] ss:$8 sm:$0xf0]
        %v239 = vor.u32 %v237, %v238
        %s240 = scalar_lea.vmem [#allocation2], 1
        %v241 = vld [vmem:[%s240] ss:$8 sm:$0xf]
        %v242 = vld [vmem:[%s240] ss:$8 sm:$0xf0]
        %v243 = vor.u32 %v241, %v242
        %s244 = scalar_lea.vmem [#allocation2], 2
        %v245 = vld [vmem:[%s244] ss:$8 sm:$0xf]
        %v246 = vld [vmem:[%s244] ss:$8 sm:$0xf0]
        %v247 = vor.u32 %v245, %v246
        %249 = vset.pattern.permute.xlu0 0
        %250 = vperm.xlu0 %249, %v236
        %v251 = vpop.permute.xlu0 %250
        %v254 = vlaneseq
        %v255 = vshrl.u32 %v254, 7
        %v256 = vsub.s32 0, %v255
        %v257 = vrot.slane %v239, %v256
        %v258 = vlaneseq
        %v259 = vshrl.u32 %v258, 7
        %v260 = vsub.s32 1, %v259
        %v261 = vrot.slane %v239, %v260
        %v262 = vlaneseq
        %v263 = vshrl.u32 %v262, 7
        %v264 = vsub.s32 2, %v263
        %v265 = vrot.slane %v239, %v264
        %v266 = vlaneseq
        %v267 = vshrl.u32 %v266, 7
        %v268 = vsub.s32 3, %v267
        %v269 = vrot.slane %v239, %v268
        %v270 = vlaneseq
        %v271 = vshrl.u32 %v270, 7
        %v272 = vsub.s32 4, %v271
        %v273 = vrot.slane %v239, %v272
        %v274 = vlaneseq
        %v275 = vshrl.u32 %v274, 7
        %v276 = vsub.s32 5, %v275
        %v277 = vrot.slane %v239, %v276
        %v278 = vlaneseq
        %v279 = vshrl.u32 %v278, 7
        %v280 = vsub.s32 6, %v279
        %v281 = vrot.slane %v239, %v280
        %v282 = vlaneseq
        %v283 = vshrl.u32 %v282, 7
        %v284 = vsub.s32 7, %v283
        %v285 = vrot.slane %v239, %v284
        %v294 = vmul.f32 %v251, %v257
        %v295 = vmul.f32 %v251, %v261
        %v296 = vmul.f32 %v251, %v265
        %v297 = vmul.f32 %v251, %v269
        %v298 = vmul.f32 %v251, %v273
        %v299 = vmul.f32 %v251, %v277
        %v300 = vmul.f32 %v251, %v281
        %v301 = vmul.f32 %v251, %v285
        %v303 = vlaneseq
        %v304 = vshrl.u32 %v303, 7
        %v305 = vsub.s32 0, %v304
        %v306 = vrot.slane %v247, %v305
        %v307 = vlaneseq
        %v308 = vshrl.u32 %v307, 7
        %v309 = vsub.s32 1, %v308
        %v310 = vrot.slane %v247, %v309
        %v311 = vlaneseq
        %v312 = vshrl.u32 %v311, 7
        %v313 = vsub.s32 2, %v312
        %v314 = vrot.slane %v247, %v313
        %v315 = vlaneseq
        %v316 = vshrl.u32 %v315, 7
        %v317 = vsub.s32 3, %v316
        %v318 = vrot.slane %v247, %v317
        %v319 = vlaneseq
        %v320 = vshrl.u32 %v319, 7
        %v321 = vsub.s32 4, %v320
        %v322 = vrot.slane %v247, %v321
        %v323 = vlaneseq
        %v324 = vshrl.u32 %v323, 7
        %v325 = vsub.s32 5, %v324
        %v326 = vrot.slane %v247, %v325
        %v327 = vlaneseq
        %v328 = vshrl.u32 %v327, 7
        %v329 = vsub.s32 6, %v328
        %v330 = vrot.slane %v247, %v329
        %v331 = vlaneseq
        %v332 = vshrl.u32 %v331, 7
        %v333 = vsub.s32 7, %v332
        %v334 = vrot.slane %v247, %v333
        %v343 = vadd.f32 %v306, %v294
        %v344 = vadd.f32 %v310, %v295
        %v345 = vadd.f32 %v314, %v296
        %v346 = vadd.f32 %v318, %v297
        %v347 = vadd.f32 %v322, %v298
        %v348 = vadd.f32 %v326, %v299
        %v349 = vadd.f32 %v330, %v300
        %v350 = vadd.f32 %v334, %v301
        %351 = vset.pattern.permute.xlu0 1
        %352 = vperm.xlu0 %351, %v236
        %v353 = vpop.permute.xlu0 %352
        %v356 = vlaneseq
        %v357 = vshrl.u32 %v356, 7
        %v358 = vsub.s32 0, %v357
        %v359 = vrot.slane %v243, %v358
        %v360 = vlaneseq
        %v361 = vshrl.u32 %v360, 7
        %v362 = vsub.s32 1, %v361
        %v363 = vrot.slane %v243, %v362
        %v364 = vlaneseq
        %v365 = vshrl.u32 %v364, 7
        %v366 = vsub.s32 2, %v365
        %v367 = vrot.slane %v243, %v366
        %v368 = vlaneseq
        %v369 = vshrl.u32 %v368, 7
        %v370 = vsub.s32 3, %v369
        %v371 = vrot.slane %v243, %v370
        %v372 = vlaneseq
        %v373 = vshrl.u32 %v372, 7
        %v374 = vsub.s32 4, %v373
        %v375 = vrot.slane %v243, %v374
        %v376 = vlaneseq
        %v377 = vshrl.u32 %v376, 7
        %v378 = vsub.s32 5, %v377
        %v379 = vrot.slane %v243, %v378
        %v380 = vlaneseq
        %v381 = vshrl.u32 %v380, 7
        %v382 = vsub.s32 6, %v381
        %v383 = vrot.slane %v243, %v382
        %v384 = vlaneseq
        %v385 = vshrl.u32 %v384, 7
        %v386 = vsub.s32 7, %v385
        %v387 = vrot.slane %v243, %v386
        %v396 = vmul.f32 %v353, %v359
        %v397 = vmul.f32 %v353, %v363
        %v398 = vmul.f32 %v353, %v367
        %v399 = vmul.f32 %v353, %v371
        %v400 = vmul.f32 %v353, %v375
        %v401 = vmul.f32 %v353, %v379
        %v402 = vmul.f32 %v353, %v383
        %v403 = vmul.f32 %v353, %v387
        %v404 = vadd.f32 %v343, %v396
        %v405 = vadd.f32 %v344, %v397
        %v406 = vadd.f32 %v345, %v398
        %v407 = vadd.f32 %v346, %v399
        %v408 = vadd.f32 %v347, %v400
        %v409 = vadd.f32 %v348, %v401
        %v410 = vadd.f32 %v349, %v402
        %v411 = vadd.f32 %v350, %v403
        %412 = vset.pattern.permute.xlu0 2
        %413 = vperm.xlu0 %412, %v236
        %v414 = vpop.permute.xlu0 %413
        %v416 = vadd.f32 %v404, %v414
        %v417 = vadd.f32 %v405, %v414
        %v418 = vadd.f32 %v406, %v414
        %v419 = vadd.f32 %v407, %v414
        %v420 = vadd.f32 %v408, %v414
        %v421 = vadd.f32 %v409, %v414
        %v422 = vadd.f32 %v410, %v414
        %v423 = vadd.f32 %v411, %v414
        %v424 = vmul.f32 %v416, 1.442695
        %v425 = vpow.pop %v424
        %v426 = vmul.f32 %v417, 1.442695
        %v427 = vpow.pop %v426
        %v428 = vmul.f32 %v418, 1.442695
        %v429 = vpow.pop %v428
        %v430 = vmul.f32 %v419, 1.442695
        %v431 = vpow.pop %v430
        %v432 = vmul.f32 %v420, 1.442695
        %v433 = vpow.pop %v432
        %v434 = vmul.f32 %v421, 1.442695
        %v435 = vpow.pop %v434
        %v436 = vmul.f32 %v422, 1.442695
        %v437 = vpow.pop %v436
        %v438 = vmul.f32 %v423, 1.442695
        %v439 = vpow.pop %v438
        %v440 = vadd.f32 %v425, %v427
        %v441 = vadd.f32 %v440, %v429
        %v442 = vadd.f32 %v441, %v431
        %v443 = vadd.f32 %v442, %v433
        %v444 = vadd.f32 %v443, %v435
        %v445 = vadd.f32 %v444, %v437
        %v446 = vadd.f32 %v445, %v439
        %447 = vadd.xlane.f32.xlu0 %v446
        %v448 = vpop.xlane.xlu0 %447
        %v449 = vadd.f32 %v448, 1e-24
        %v450 = vrcp.pop %v449
        %v451 = vmul.f32 %v425, %v450
        %v452 = vmul.f32 %v427, %v450
        %v453 = vmul.f32 %v429, %v450
        %v454 = vmul.f32 %v431, %v450
        %v455 = vmul.f32 %v433, %v450
        %v456 = vmul.f32 %v435, %v450
        %v457 = vmul.f32 %v437, %v450
        %v458 = vmul.f32 %v439, %v450
        %v459 = vlog2.pop %v449
        %v460 = vmul.f32 %v459, 0.6931472
        %v461 = vsub.f32 %v416, %v460
        %v462 = vsub.f32 %v417, %v460
        %v463 = vsub.f32 %v418, %v460
        %v464 = vsub.f32 %v419, %v460
        %v465 = vsub.f32 %v420, %v460
        %v466 = vsub.f32 %v421, %v460
        %v467 = vsub.f32 %v422, %v460
        %v468 = vsub.f32 %v423, %v460
        %v469 = vadd.f32 %v228, 1e-24
        %v470 = vadd.f32 %v229, 1e-24
        %v471 = vadd.f32 %v230, 1e-24
        %v472 = vadd.f32 %v231, 1e-24
        %v473 = vadd.f32 %v232, 1e-24
        %v474 = vadd.f32 %v233, 1e-24
        %v475 = vadd.f32 %v234, 1e-24
        %v476 = vadd.f32 %v235, 1e-24
        %v477 = vlog2.pop %v469
        %v478 = vmul.f32 %v477, 0.6931472
        %v479 = vlog2.pop %v470
        %v480 = vmul.f32 %v479, 0.6931472
        %v481 = vlog2.pop %v471
        %v482 = vmul.f32 %v481, 0.6931472
        %v483 = vlog2.pop %v472
        %v484 = vmul.f32 %v483, 0.6931472
        %v485 = vlog2.pop %v473
        %v486 = vmul.f32 %v485, 0.6931472
        %v487 = vlog2.pop %v474
        %v488 = vmul.f32 %v487, 0.6931472
        %v489 = vlog2.pop %v475
        %v490 = vmul.f32 %v489, 0.6931472
        %v491 = vlog2.pop %v476
        %v492 = vmul.f32 %v491, 0.6931472
        %v493 = vadd.f32 %v228, %v451
        %v494 = vadd.f32 %v229, %v452
        %v495 = vadd.f32 %v230, %v453
        %v496 = vadd.f32 %v231, %v454
        %v497 = vadd.f32 %v232, %v455
        %v498 = vadd.f32 %v233, %v456
        %v499 = vadd.f32 %v234, %v457
        %v500 = vadd.f32 %v235, %v458
        %v501 = vmul.f32 %v228, %v478
        %v502 = vmul.f32 %v229, %v480
        %v503 = vmul.f32 %v230, %v482
        %v504 = vmul.f32 %v231, %v484
        %v505 = vmul.f32 %v232, %v486
        %v506 = vmul.f32 %v233, %v488
        %v507 = vmul.f32 %v234, %v490
        %v508 = vmul.f32 %v235, %v492
        %v509 = vmul.f32 %v451, %v461
        %v510 = vmul.f32 %v452, %v462
        %v511 = vmul.f32 %v453, %v463
        %v512 = vmul.f32 %v454, %v464
        %v513 = vmul.f32 %v455, %v465
        %v514 = vmul.f32 %v456, %v466
        %v515 = vmul.f32 %v457, %v467
        %v516 = vmul.f32 %v458, %v468
        %v517 = vadd.f32 %v501, %v509
        %v518 = vadd.f32 %v502, %v510
        %v519 = vadd.f32 %v503, %v511
        %v520 = vadd.f32 %v504, %v512
        %v521 = vadd.f32 %v505, %v513
        %v522 = vadd.f32 %v506, %v514
        %v523 = vadd.f32 %v507, %v515
        %v524 = vadd.f32 %v508, %v516
        %v525 = vadd.f32 %v493, 1e-24
        %v526 = vadd.f32 %v494, 1e-24
        %v527 = vadd.f32 %v495, 1e-24
        %v528 = vadd.f32 %v496, 1e-24
        %v529 = vadd.f32 %v497, 1e-24
        %v530 = vadd.f32 %v498, 1e-24
        %v531 = vadd.f32 %v499, 1e-24
        %v532 = vadd.f32 %v500, 1e-24
        %v533 = vlog2.pop %v525
        %v534 = vmul.f32 %v533, 0.6931472
        %v535 = vlog2.pop %v526
        %v536 = vmul.f32 %v535, 0.6931472
        %v537 = vlog2.pop %v527
        %v538 = vmul.f32 %v537, 0.6931472
        %v539 = vlog2.pop %v528
        %v540 = vmul.f32 %v539, 0.6931472
        %v541 = vlog2.pop %v529
        %v542 = vmul.f32 %v541, 0.6931472
        %v543 = vlog2.pop %v530
        %v544 = vmul.f32 %v543, 0.6931472
        %v545 = vlog2.pop %v531
        %v546 = vmul.f32 %v545, 0.6931472
        %v547 = vlog2.pop %v532
        %v548 = vmul.f32 %v547, 0.6931472
        %v549 = vsub.f32 %v534, 0.6931472
        %v550 = vsub.f32 %v536, 0.6931472
        %v551 = vsub.f32 %v538, 0.6931472
        %v552 = vsub.f32 %v540, 0.6931472
        %v553 = vsub.f32 %v542, 0.6931472
        %v554 = vsub.f32 %v544, 0.6931472
        %v555 = vsub.f32 %v546, 0.6931472
        %v556 = vsub.f32 %v548, 0.6931472
        %v557 = vmul.f32 %v493, %v549
        %v558 = vmul.f32 %v494, %v550
        %v559 = vmul.f32 %v495, %v551
        %v560 = vmul.f32 %v496, %v552
        %v561 = vmul.f32 %v497, %v553
        %v562 = vmul.f32 %v498, %v554
        %v563 = vmul.f32 %v499, %v555
        %v564 = vmul.f32 %v500, %v556
        %v565 = vsub.f32 %v517, %v557
        %v566 = vsub.f32 %v518, %v558
        %v567 = vsub.f32 %v519, %v559
        %v568 = vsub.f32 %v520, %v560
        %v569 = vsub.f32 %v521, %v561
        %v570 = vsub.f32 %v522, %v562
        %v571 = vsub.f32 %v523, %v563
        %v572 = vsub.f32 %v524, %v564
        %v573 = vld [vmem:[%s212] sm:$0xff]
        %v574 = vld [vmem:[%s212 + $0x8] sm:$0xff]
        %v575 = vld [vmem:[%s212 + $0x10] sm:$0xff]
        %v576 = vld [vmem:[%s212 + $0x18] sm:$0xff]
        %v577 = vld [vmem:[%s212 + $0x20] sm:$0xff]
        %v578 = vld [vmem:[%s212 + $0x28] sm:$0xff]
        %v579 = vld [vmem:[%s212 + $0x30] sm:$0xff]
        %v580 = vld [vmem:[%s212 + $0x38] sm:$0xff]
        %581 = vset.pattern.permute.xlu0 3
        %582 = vperm.xlu0 %581, %v236
        %v583 = vpop.permute.xlu0 %582
        %v585 = vmul.f32 %v583, %v565
        %v586 = vmul.f32 %v583, %v566
        %v587 = vmul.f32 %v583, %v567
        %v588 = vmul.f32 %v583, %v568
        %v589 = vmul.f32 %v583, %v569
        %v590 = vmul.f32 %v583, %v570
        %v591 = vmul.f32 %v583, %v571
        %v592 = vmul.f32 %v583, %v572
        %v593 = vadd.f32 %v573, %v585
        %v594 = vadd.f32 %v574, %v586
        %v595 = vadd.f32 %v575, %v587
        %v596 = vadd.f32 %v576, %v588
        %v597 = vadd.f32 %v577, %v589
        %v598 = vadd.f32 %v578, %v590
        %v599 = vadd.f32 %v579, %v591
        %v600 = vadd.f32 %v580, %v592
        %601 = vst [vmem:[%s212] sm:$0xff] %v593
        %602 = vst [vmem:[%s212 + $0x8] sm:$0xff] %v594
        %603 = vst [vmem:[%s212 + $0x10] sm:$0xff] %v595
        %604 = vst [vmem:[%s212 + $0x18] sm:$0xff] %v596
        %605 = vst [vmem:[%s212 + $0x20] sm:$0xff] %v597
        %606 = vst [vmem:[%s212 + $0x28] sm:$0xff] %v598
        %607 = vst [vmem:[%s212 + $0x30] sm:$0xff] %v599
        %608 = vst [vmem:[%s212 + $0x38] sm:$0xff] %v600
        %s609 = sand.u32 %s102, 1
        %s610 = scalar_lea.sflag [#allocation4], %s609
        %s611 = sand.u32 %s102, 1
        %s612 = smul.addr %s611, 64
        %s613 = scalar_lea.vmem [#allocation7], %s612
        // Predicated region
        $region41: #{tpu_custom_call.1} parent=31 // pred_check
          %p614 = pneg %p112
        $region42: #{tpu_custom_call.1} parent=31 // pred_check_branch
          %616 = sbr.rel (%p614) target = $region44
        $region43: #{tpu_custom_call.1} parent=31 // pred_region
          %s618 = ssub.s32 1024, 1024
          %619 = vsyncadd %s610, %s618
          %s620 = smul.addr %s21, 8
          %s621 = smul.addr %s620, 128
          %s622 = scalar_lea.hbm %s3, %s621
          %s624 = sshll.u32 %s613, 4
          %s625 = int_to_ptr.vmem [resolvable:$true] %s624
          %627 = dma.vmem_to_hbm [thread:$0]  %s625, 1024, %s622, %s610
        $region44: #{tpu_custom_call.1} parent=31 // pred_fallthru
          _
      $region32: #{tpu_custom_call.1} parent=5 // pred_fallthru
        _
      %p628 = scmp.le.s32.totalorder 2, %s16
      // Predicated region
      $region45: #{tpu_custom_call.1} parent=5 // pred_check
        %p629 = pneg %p628
      $region46: #{tpu_custom_call.1} parent=5 // pred_check_branch
        %631 = sbr.rel (%p629) target = $region48
      $region47: #{tpu_custom_call.1} parent=5 // pred_region
        %s632 = ssub.s32 %s16, 2
        // Predicated region
        $region49: #{tpu_custom_call.1} parent=47 // pred_check
          %p633 = pneg %p118
        $region50: #{tpu_custom_call.1} parent=47 // pred_check_branch
          %635 = sbr.rel (%p633) target = $region52
        $region51: #{tpu_custom_call.1} parent=47 // pred_region
          %s636 = sand.u32 %s103, 1
          %s637 = scalar_lea.sflag [#allocation4], %s636
          %s638 = sand.u32 %s103, 1
          %s639 = smul.addr %s638, 64
          %s640 = scalar_lea.vmem [#allocation7], %s639
          %641 = dma.done %s637, 1024
        $region52: #{tpu_custom_call.1} parent=47 // pred_fallthru
          _
      $region48: #{tpu_custom_call.1} parent=5 // pred_fallthru
        _
    $region6: #{tpu_custom_call.1} parent=1 // loop_footer
      %s20 = sadd.s32 1, %s16
    $region7: #{tpu_custom_call.1} parent=1 // loop_footer_branch
      %15 = sbr.rel target = $region3
    $region8: #{tpu_custom_call.1} parent=1 // loop_exit
      _
    %642 = vsyncpa [#allocation3], 1
    %s643 = scalar_lea.sflag [#allocation3], 1
    %644 = vsyncpa %s643, 1
    %645 = vsyncpa [#allocation6], 1
    %s646 = scalar_lea.sflag [#allocation6], 1
    %647 = vsyncpa %s646, 1
    %648 = vsyncpa [#allocation4], 1
    %s649 = scalar_lea.sflag [#allocation4], 1
    %650 = vsyncpa %s649, 1

</llo_original>
